<compile_context>
chip_gen: v5e
topology: v5e:2x2
jax: 0.10.0
libtpu: 0.0.40
codegen_flags: <defaults>
</compile_context>

<pallas_src>
import functools

import jax
import jax.numpy as jnp
from jax.experimental import pallas as pl
from jax.experimental.pallas import tpu as pltpu

# Constants from the PyTorch module's registered buffers.
_MEAN = (0.485, 0.456, 0.406)
_STD = (0.229, 0.224, 0.225)

# Tile cap for the flattened-spatial (lane) axis.  Multiple of 128.
# in + out double-buffered f32 blocks stay at a few MiB even with the
# 3-row -> 8-sublane padding, comfortably inside v7x's 64 MiB VMEM.
_MAX_TILE_HW = 32768


def _make_preproc_kernel(C: int):
    # Fold (x/255 - m)/s  ->  x * scale + bias  at trace time.
    scales = tuple(1.0 / (255.0 * s) for s in _STD[:C])
    biases = tuple(-m / s for m, s in zip(_MEAN[:C], _STD[:C]))

    def kernel(x_ref, o_ref):
        # x_ref/o_ref: (1, C, TILE_HW).  Cast inside the kernel so uint8/bf16
        # inputs are supported without a separate conversion pass over HBM.
        x = x_ref[...].astype(jnp.float32)

        # Build per-channel scale/bias vectors from baked-in scalar constants
        # (iota + selects: a couple of VPU ops on one vreg, fully hidden
        # behind the HBM-bound data stream).
        ch = jax.lax.broadcasted_iota(jnp.int32, (1, C, 1), dimension=1)
        scale = jnp.full((1, C, 1), scales[C - 1], dtype=jnp.float32)
        bias = jnp.full((1, C, 1), biases[C - 1], dtype=jnp.float32)
        for c in range(C - 1):
            scale = jnp.where(ch == c, jnp.float32(scales[c]), scale)
            bias = jnp.where(ch == c, jnp.float32(biases[c]), bias)

        # Single fused mul+add per element, lane-dense store.
        o_ref[...] = (x * scale + bias).astype(o_ref.dtype)

    return kernel


@functools.partial(jax.jit, static_argnames=("out_dtype",))
def preproc_norm(x, *, out_dtype=jnp.float32):
    """x: (N, 3, H, W) array (float32 / bf16 / uint8). Returns (N, 3, H, W)."""
    N, C, H, W = x.shape
    assert C == 3, "PreprocNorm is defined for 3-channel (RGB) inputs"
    HW = H * W
    x2 = x.reshape(N, C, HW)  # free, contiguous reshape

    # Full-extent block for small images (always a legal block shape); for
    # large images tile the lane axis in multiples of 128.  Ragged edges are
    # handled by Pallas block masking (elementwise op -> padding is harmless).
    tile_hw = HW if HW <= _MAX_TILE_HW else _MAX_TILE_HW
    grid = (N, pl.cdiv(HW, tile_hw))

    out = pl.pallas_call(
        _make_preproc_kernel(C),
        out_shape=jax.ShapeDtypeStruct((N, C, HW), out_dtype),
        grid=grid,
        in_specs=[pl.BlockSpec((1, C, tile_hw), lambda i, j: (i, 0, j))],
        out_specs=pl.BlockSpec((1, C, tile_hw), lambda i, j: (i, 0, j)),
        compiler_params=pltpu.CompilerParams(
            dimension_semantics=("parallel", "parallel")),
    )(x2)

    return out.reshape(N, C, H, W)


if __name__ == "__main__":
    key = jax.random.PRNGKey(0)
    # Small NCHW input consistent with the module (3 channels, raw 0..255).
    x = jax.random.uniform(key, (2, 3, 16, 16), dtype=jnp.float32,
                           minval=0.0, maxval=255.0)

    # Reference = literal PyTorch-module math.
    m = jnp.array(_MEAN, dtype=jnp.float32)[None, :, None, None]
    s = jnp.array(_STD, dtype=jnp.float32)[None, :, None, None]

    # float32 path (exact module semantics).
    y = preproc_norm(x)
    jax.block_until_ready(y)
    y_ref = (x / 255.0 - m) / s
    assert y.shape == x.shape and y.dtype == jnp.float32
    assert jnp.allclose(y, y_ref, atol=1e-5, rtol=1e-5)

    # uint8 path (byte-reduction optimization: cast happens inside the kernel).
    x_u8 = jnp.floor(x).astype(jnp.uint8)
    y_u8 = preproc_norm(x_u8)
    jax.block_until_ready(y_u8)
    y_u8_ref = (x_u8.astype(jnp.float32) / 255.0 - m) / s
    assert jnp.allclose(y_u8, y_u8_ref, atol=1e-5, rtol=1e-5)

    print("KERNEL_OK")
</pallas_src>

<mosaic_0001>
module attributes {stable_mosaic.version = 11 : i64} {
  func.func @kernel(%arg0: i32, %arg1: i32, %arg2: memref<1x3x256xf32, #tpu.memory_space<vmem>>, %arg3: memref<1x3x256xf32, #tpu.memory_space<vmem>>) attributes {dimension_semantics = [#tpu.dimension_semantics<parallel>, #tpu.dimension_semantics<parallel>], iteration_bounds = array<i64: 2, 1>, scalar_prefetch = 0 : i64, scratch_operands = 0 : i64, tpu.core_type = #tpu.core_type<tc>, window_params = [{transform_indices = @transform_0, window_bounds = array<i64: 1, 3, 256>}, {transform_indices = @transform_1, window_bounds = array<i64: 1, 3, 256>}]} {
    %c0 = arith.constant 0 : index
    %c0_0 = arith.constant 0 : index
    %c0_1 = arith.constant 0 : index
    %0 = vector.load %arg2[%c0, %c0_0, %c0_1] : memref<1x3x256xf32, #tpu.memory_space<vmem>>, vector<1x3x256xf32>
    %1 = tpu.iota {dimensions = array<i32: 1>} : vector<1x3x1xi32>
    %cst = arith.constant 0.0174291935 : f32
    %2 = vector.broadcast %cst : f32 to vector<1x3x1xf32>
    %cst_2 = arith.constant -1.80444443 : f32
    %3 = vector.broadcast %cst_2 : f32 to vector<1x3x1xf32>
    %c0_i32 = arith.constant 0 : i32
    %4 = vector.broadcast %c0_i32 : i32 to vector<1x3x1xi32>
    %5 = arith.cmpi eq, %1, %4 : vector<1x3x1xi32>
    %cst_3 = arith.constant 0.0171247534 : f32
    %6 = vector.broadcast %cst_3 : f32 to vector<1x3x1xf32>
    %7 = arith.select %5, %6, %2 : vector<1x3x1xi1>, vector<1x3x1xf32>
    %c0_i32_4 = arith.constant 0 : i32
    %8 = vector.broadcast %c0_i32_4 : i32 to vector<1x3x1xi32>
    %9 = arith.cmpi eq, %1, %8 : vector<1x3x1xi32>
    %cst_5 = arith.constant -2.11790395 : f32
    %10 = vector.broadcast %cst_5 : f32 to vector<1x3x1xf32>
    %11 = arith.select %9, %10, %3 : vector<1x3x1xi1>, vector<1x3x1xf32>
    %c1_i32 = arith.constant 1 : i32
    %12 = vector.broadcast %c1_i32 : i32 to vector<1x3x1xi32>
    %13 = arith.cmpi eq, %1, %12 : vector<1x3x1xi32>
    %cst_6 = arith.constant 0.0175070036 : f32
    %14 = vector.broadcast %cst_6 : f32 to vector<1x3x1xf32>
    %15 = arith.select %13, %14, %7 : vector<1x3x1xi1>, vector<1x3x1xf32>
    %c1_i32_7 = arith.constant 1 : i32
    %16 = vector.broadcast %c1_i32_7 : i32 to vector<1x3x1xi32>
    %17 = arith.cmpi eq, %1, %16 : vector<1x3x1xi32>
    %cst_8 = arith.constant -2.03571439 : f32
    %18 = vector.broadcast %cst_8 : f32 to vector<1x3x1xf32>
    %19 = arith.select %17, %18, %11 : vector<1x3x1xi1>, vector<1x3x1xf32>
    %20 = vector.broadcast %15 : vector<1x3x1xf32> to vector<1x3x256xf32>
    %21 = arith.mulf %0, %20 : vector<1x3x256xf32>
    %22 = vector.broadcast %19 : vector<1x3x1xf32> to vector<1x3x256xf32>
    %23 = arith.addf %21, %22 : vector<1x3x256xf32>
    %c0_9 = arith.constant 0 : index
    %c0_10 = arith.constant 0 : index
    %c0_11 = arith.constant 0 : index
    %24 = vector.load %arg3[%c0_9, %c0_10, %c0_11] : memref<1x3x256xf32, #tpu.memory_space<vmem>>, vector<1x3x256xf32>
    tpu.vector_store %arg3[%c0_9, %c0_10, %c0_11], %23 {strides = array<i32>} : memref<1x3x256xf32, #tpu.memory_space<vmem>>, vector<1x3x256xf32>,
    return
  }
  func.func @transform_0(%arg0: i32, %arg1: i32) -> (i32, i32, i32) {
    %c0_i32 = arith.constant 0 : i32
    %c0_i32_0 = arith.constant 0 : i32
    return %arg0, %c0_i32, %arg1 : i32, i32, i32
  }
  func.func @transform_1(%arg0: i32, %arg1: i32) -> (i32, i32, i32) {
    %c0_i32 = arith.constant 0 : i32
    %c0_i32_0 = arith.constant 0 : i32
    return %arg0, %c0_i32, %arg1 : i32, i32, i32
  }
}

</mosaic_0001>

<llo_original>
// kernel: preproc_norm.1
$region0: #{preproc_norm.1}
  #allocation0 [shape = 'u32[]', space=smem, size = 0x4, offset = 0x4, fixed_abs, tag = 'smem constant byte address 0x4 - core index']
  #allocation1 [shape = 'u32[72,128]{1,0:T(1,128)}', space=vmem, size = 0x9000, scoped, tag = 'internal scratch']
  %s0 = inlined_call_operand.vmem [shape: f32[2,3,256], index: 0, kind: input, shape index: {}]
  %s1 = inlined_call_operand.vmem [shape: f32[2,3,256], index: 1, kind: output, shape index: {}]
  %s2 = sld [smem:[#allocation0]]
  $region37: #{preproc_norm.1} parent=0
    _
  %s4 = ssub.s32 1, %s2
  %s5 = scalar_select 0, %s4, %s2
  loop: start=0, step=1, limit=4
  $region2: #{preproc_norm.1} parent=0 // loop_pre_header
    _
  $region3: #{preproc_norm.1} parent=0 // loop_header
    %s7 = sphi 0, %s11
    %p8 = scmp.ge.s32.totalorder %s7, 4
    %s14 = sphi 0, %s26
    %s15 = sphi 0, %s22
    %s16 = sphi 0, %s14
    %s17 = sphi 0, %s15
    %s18 = sphi 0, %s16
    %s19 = sphi 0, %s17
    %s31 = sphi 0, %s33
    %s34 = sphi 0, %s31
    %s35 = sphi 0, %s34
    %s51 = sphi 0, %s35
    %s59 = sphi 0, %s61
    %s62 = sphi 0, %s59
    %s63 = sphi 0, %s62
    %s79 = sphi 0, %s63
  $region4: #{preproc_norm.1} parent=0 // loop_header_branch
    %10 = sbr.rel (%p8) target = $region8
  $region5: #{preproc_norm.1} parent=0 // loop_body
    %s12 = ssub.s32 %s7, 1
    %s13 = ssub.s32 %s7, 2
    %s20 = sadd.s32 1, %s15
    %p21 = scmp.ge.s32.totalorder %s20, 1
    %s22 = scalar_select %p21, 0, %s20
    %s23 = sadd.s32 1, %s14
    %s24 = scalar_select %p21, %s23, %s14
    %p25 = scmp.ge.s32.totalorder %s24, 2
    %s26 = scalar_select %p25, 0, %s24
    %s27 = ssub.s32 %s14, %s26
    %s28 = ssub.s32 %s15, %s22
    %s29 = sor.u32 %s27, %s28
    %p30 = scmp.eq.s32.totalorder %s29, 0
    %s32 = sadd.s32 %s31, 1
    %s33 = scalar_select %p30, %s31, %s32
    %p36 = pneg %p30
    %p37 = scmp.eq.s32.totalorder %s7, 1
    %p38 = por %p36, %p37
    %p39 = scmp.ne.s32.totalorder %s31, %s34
    %p40 = scmp.eq.s32.totalorder %s7, 0
    %p41 = por %p39, %p40
    %p42 = scmp.ne.s32.totalorder %s31, %s34
    %p43 = scmp.eq.s32.totalorder %s12, 1
    %p44 = por %p42, %p43
    %p45 = scmp.ne.s32.totalorder %s34, %s35
    %p46 = scmp.eq.s32.totalorder %s12, 0
    %p47 = por %p45, %p46
    %p48 = scmp.ne.s32.totalorder %s34, %s35
    %p49 = scmp.eq.s32.totalorder %s13, 1
    %p50 = por %p48, %p49
    %p52 = scmp.ne.s32.totalorder %s35, %s51
    %p53 = scmp.eq.s32.totalorder %s13, 0
    %p54 = por %p52, %p53
    %s55 = ssub.s32 %s14, %s26
    %s56 = ssub.s32 %s15, %s22
    %s57 = sor.u32 %s55, %s56
    %p58 = scmp.eq.s32.totalorder %s57, 0
    %s60 = sadd.s32 %s59, 1
    %s61 = scalar_select %p58, %s59, %s60
    %p64 = pneg %p58
    %p65 = scmp.eq.s32.totalorder %s7, 1
    %p66 = por %p64, %p65
    %p67 = scmp.ne.s32.totalorder %s59, %s62
    %p68 = scmp.eq.s32.totalorder %s7, 0
    %p69 = por %p67, %p68
    %p70 = scmp.ne.s32.totalorder %s59, %s62
    %p71 = scmp.eq.s32.totalorder %s12, 1
    %p72 = por %p70, %p71
    %p73 = scmp.ne.s32.totalorder %s62, %s63
    %p74 = scmp.eq.s32.totalorder %s12, 0
    %p75 = por %p73, %p74
    %p76 = scmp.ne.s32.totalorder %s62, %s63
    %p77 = scmp.eq.s32.totalorder %s13, 1
    %p78 = por %p76, %p77
    %p80 = scmp.ne.s32.totalorder %s63, %s79
    %p81 = scmp.eq.s32.totalorder %s13, 0
    %p82 = por %p80, %p81
    %p83 = scmp.le.s32.totalorder 1, %s7
    %p84 = scmp.lt.s32.totalorder %s7, 3
    %p85 = pnand %p83, %p84
    %p86 = pneg %p85
    // Predicated region
    $region9: #{preproc_norm.1} parent=5 // pred_check
      _
    $region10: #{preproc_norm.1} parent=5 // pred_check_branch
      %88 = sbr.rel (%p85) target = $region12
    $region11: #{preproc_norm.1} parent=5 // pred_region
      %s89 = ssub.s32 %s7, 1
    $region12: #{preproc_norm.1} parent=5 // pred_fallthru
      _
    %p90 = scmp.lt.s32.totalorder %s7, 2
    // Predicated region
    $region13: #{preproc_norm.1} parent=5 // pred_check
      %p91 = pneg %p90
    $region14: #{preproc_norm.1} parent=5 // pred_check_branch
      %93 = sbr.rel (%p91) target = $region16
    $region15: #{preproc_norm.1} parent=5 // pred_region
      // Predicated region
      $region17: #{preproc_norm.1} parent=15 // pred_check
        %p94 = pneg %p41
      $region18: #{preproc_norm.1} parent=15 // pred_check_branch
        %96 = sbr.rel (%p94) target = $region20
      $region19: #{preproc_norm.1} parent=15 // pred_region
        %s97 = smul.u32 2, %s15
        %p98 = scmp.lt.s32.totalorder %s14, 1
        %s99 = scalar_select %p98, %s14, 1
        %p100 = scmp.lt.s32.totalorder %s97, 1
        %s101 = scalar_select %p100, %s97, 1
        %s102 = smul.addr %s99, 2
        %s103 = sadd.s32 %s101, %s102
        %s104 = smul.addr %s103, 4
        %s105 = scalar_lea.vmem %s0, %s104
        %s106 = smul.u32 2, %s15
      $region20: #{preproc_norm.1} parent=15 // pred_fallthru
        _
    $region16: #{preproc_norm.1} parent=5 // pred_fallthru
      _
    %p107 = scmp.le.s32.totalorder 1, %s7
    %p108 = scmp.lt.s32.totalorder %s7, 3
    %p109 = pnand %p107, %p108
    %p110 = pneg %p109
    // Predicated region
    $region21: #{preproc_norm.1} parent=5 // pred_check
      _
    $region22: #{preproc_norm.1} parent=5 // pred_check_branch
      %112 = sbr.rel (%p109) target = $region24
    $region23: #{preproc_norm.1} parent=5 // pred_region
      %s113 = ssub.s32 %s7, 1
      %s114 = smul.u32 2, %s17
      %p115 = scmp.lt.s32.totalorder %s16, 1
      %s116 = scalar_select %p115, %s16, 1
      %p117 = scmp.lt.s32.totalorder %s114, 1
      %s118 = scalar_select %p117, %s114, 1
      %s119 = smul.addr %s116, 2
      %s120 = sadd.s32 %s118, %s119
      %s121 = smul.addr %s120, 4
      %s122 = scalar_lea.vmem %s0, %s121
      %p123 = pneg %p47
      %p124 = pneg %p44
      %p125 = pneg %p75
      %p126 = pneg %p72
      %s127 = smul.u32 2, %s17
      %p128 = scmp.lt.s32.totalorder %s16, 1
      %s129 = scalar_select %p128, %s16, 1
      %p130 = scmp.lt.s32.totalorder %s127, 1
      %s131 = scalar_select %p130, %s127, 1
      %s132 = smul.addr %s129, 2
      %s133 = sadd.s32 %s131, %s132
      %s134 = smul.addr %s133, 4
      %s135 = scalar_lea.vmem %s1, %s134
      %s136 = smul.u32 2, %s17
      %p137 = scmp.lt.s32.totalorder %s16, 1
      %s138 = scalar_select %p137, %s16, 1
      %p139 = scmp.lt.s32.totalorder %s136, 1
      %s140 = scalar_select %p139, %s136, 1
      %s141 = smul.addr %s138, 2
      %s142 = sadd.s32 %s140, %s141
      %s143 = smul.addr %s142, 4
      %s144 = scalar_lea.vmem %s0, %s143
      %s145 = smul.u32 2, %s17
      %s146 = smul.u32 2, %s17
      %p147 = scmp.lt.s32.totalorder %s16, 1
      %s148 = scalar_select %p147, %s16, 1
      %p149 = scmp.lt.s32.totalorder %s146, 1
      %s150 = scalar_select %p149, %s146, 1
      %s151 = smul.addr %s148, 2
      %s152 = sadd.s32 %s150, %s151
      %s153 = smul.addr %s152, 4
      %s154 = scalar_lea.vmem %s1, %s153
      %s155 = smul.u32 2, %s17
      %v156 = vld [vmem:[%s144] sm:$0x77]
      %v157 = vlaneseq
      %v158 = vshrl.u32 %v157, 7
      %vm159 = vcmp.eq.s32.totalorder %v158, 0
      %v160 = vsel %vm159, 0.017124753, 0.017429193
      %v161 = vsel %vm159, -2.117904, -1.8044444
      %vm162 = vcmp.eq.s32.totalorder %v158, 1
      %v163 = vsel %vm162, 0.017507004, %v160
      %v164 = vsel %vm162, -2.0357144, %v161
      %v167 = vunpack.c.l.s4 839922192
      %v168 = vunpack.c.0.s8 %v167
      %v169 = vperm.slane %v163, %v168
      %v171 = vmul.f32 %v156, %v169
      %v174 = vunpack.c.l.s4 839922192
      %v175 = vunpack.c.0.s8 %v174
      %v176 = vperm.slane %v164, %v175
      %v178 = vadd.f32 %v171, %v176
      %179 = vst [vmem:[%s154] sm:$0x77] %v178
      %s180 = smul.u32 2, %s17
      %p181 = scmp.lt.s32.totalorder %s16, 1
      %s182 = scalar_select %p181, %s16, 1
      %p183 = scmp.lt.s32.totalorder %s180, 1
      %s184 = scalar_select %p183, %s180, 1
      %s185 = smul.addr %s182, 2
      %s186 = sadd.s32 %s184, %s185
      %s187 = smul.addr %s186, 4
      %s188 = scalar_lea.vmem %s1, %s187
      // Predicated region
      $region25: #{preproc_norm.1} parent=23 // pred_check
        %p189 = pneg %p72
      $region26: #{preproc_norm.1} parent=23 // pred_check_branch
        %191 = sbr.rel (%p189) target = $region28
      $region27: #{preproc_norm.1} parent=23 // pred_region
        %s192 = smul.u32 2, %s17
      $region28: #{preproc_norm.1} parent=23 // pred_fallthru
        _
    $region24: #{preproc_norm.1} parent=5 // pred_fallthru
      _
    %p193 = scmp.le.s32.totalorder 2, %s7
    // Predicated region
    $region29: #{preproc_norm.1} parent=5 // pred_check
      %p194 = pneg %p193
    $region30: #{preproc_norm.1} parent=5 // pred_check_branch
      %196 = sbr.rel (%p194) target = $region32
    $region31: #{preproc_norm.1} parent=5 // pred_region
      %s197 = ssub.s32 %s7, 2
      // Predicated region
      $region33: #{preproc_norm.1} parent=31 // pred_check
        %p198 = pneg %p78
      $region34: #{preproc_norm.1} parent=31 // pred_check_branch
        %200 = sbr.rel (%p198) target = $region36
      $region35: #{preproc_norm.1} parent=31 // pred_region
        %s201 = smul.u32 2, %s19
        %p202 = scmp.lt.s32.totalorder %s18, 1
        %s203 = scalar_select %p202, %s18, 1
        %p204 = scmp.lt.s32.totalorder %s201, 1
        %s205 = scalar_select %p204, %s201, 1
        %s206 = smul.addr %s203, 2
        %s207 = sadd.s32 %s205, %s206
        %s208 = smul.addr %s207, 4
        %s209 = scalar_lea.vmem %s1, %s208
      $region36: #{preproc_norm.1} parent=31 // pred_fallthru
        _
    $region32: #{preproc_norm.1} parent=5 // pred_fallthru
      _
  $region6: #{preproc_norm.1} parent=0 // loop_footer
    %s11 = sadd.s32 1, %s7
  $region7: #{preproc_norm.1} parent=0 // loop_footer_branch
    %6 = sbr.rel target = $region3
  $region8: #{preproc_norm.1} parent=0 // loop_exit
    _

</llo_original>
